<compile_context>
chip_gen: v7x
topology: tpu7x:2x2x1
jax: 0.10.0
libtpu: 0.0.40
codegen_flags: <defaults>
</compile_context>

<pallas_src>
import functools

import jax
import jax.numpy as jnp
from jax.experimental import pallas as pl
from jax.experimental.pallas import tpu as pltpu

_LANE = 128
_SUBLANE = 8

_INV_SQRT2 = 0.7071067811865475        # 1/sqrt(2)
_SQRT_2_OVER_PI = 0.7978845608028654   # sqrt(2/pi)
_TANH_COEFF = 0.044715


def _gelu_exact_kernel(x_ref, o_ref):
    x = x_ref[...].astype(jnp.float32)
    # exact GELU: 0.5 * x * (1 + erf(x / sqrt(2)))
    y = 0.5 * x * (1.0 + jax.lax.erf(x * _INV_SQRT2))
    o_ref[...] = y.astype(o_ref.dtype)


def _gelu_tanh_kernel(x_ref, o_ref):
    # Opt-in tanh approximation: tanh lowers to the EUP slot (separate VLIW
    # slot), reducing VALU pressure for bf16 on v5e if that slot binds first.
    x = x_ref[...].astype(jnp.float32)
    inner = _SQRT_2_OVER_PI * (x + _TANH_COEFF * x * x * x)
    y = 0.5 * x * (1.0 + jnp.tanh(inner))
    o_ref[...] = y.astype(o_ref.dtype)


@functools.lru_cache(maxsize=1)
def _vmem_plan():
    """Returns (target_block_bytes, vmem_limit_bytes), generation-aware."""
    try:
        vmem_cap = int(pltpu.get_tpu_info().vmem_capacity_bytes)
    except Exception:  # interpret mode / query unavailable -> conservative
        vmem_cap = 128 * 1024 * 1024
    if vmem_cap <= 64 * 1024 * 1024:
        # v7x-class: 64 MiB physical per TC. 4 MiB blocks -> ~16 MiB of
        # double-buffered in+out, well under a 48 MiB scoped limit.
        return 4 * 1024 * 1024, 48 * 1024 * 1024
    # v5e / v6e: 128 MiB physical. 8 MiB blocks -> ~32 MiB double-buffered.
    return 8 * 1024 * 1024, 64 * 1024 * 1024


def _gelu_2d(x2d: jax.Array, kernel) -> jax.Array:
    """Run the GELU kernel over a lane-dense (rows, W) slab, W % 128 == 0."""
    rows, W = x2d.shape
    dtype = x2d.dtype
    itemsize = jnp.dtype(dtype).itemsize
    target_block_bytes, vmem_limit = _vmem_plan()

    # Block rows: as large as the per-generation target allows, multiple of 8.
    br = target_block_bytes // (W * itemsize)
    br = max(_SUBLANE, (br // _SUBLANE) * _SUBLANE)
    if br > rows:
        br = rows

    total_bytes = rows * W * itemsize
    # For non-trivial slabs, never run a single-block grid: guarantee >= 2
    # blocks so the "parallel" axis shards across both TensorCores on v7x.
    if br >= rows and total_bytes >= (1 << 20) and rows > _SUBLANE:
        half = -(-rows // 2)                            # ceil(rows / 2)
        half = -(-half // _SUBLANE) * _SUBLANE          # round up to x8
        if half < rows:
            br = half

    if br >= rows:
        br = rows          # full-extent block is always layout-legal
        grid = (1,)
    else:
        grid = (pl.cdiv(rows, br),)   # Pallas masks the ragged last block

    n_elems = rows * W
    cost = pl.CostEstimate(
        flops=8 * n_elems,
        transcendentals=n_elems,
        bytes_accessed=2 * n_elems * itemsize,
    )

    return pl.pallas_call(
        kernel,
        out_shape=jax.ShapeDtypeStruct((rows, W), dtype),
        grid_spec=pltpu.PrefetchScalarGridSpec(
            num_scalar_prefetch=0,
            grid=grid,
            in_specs=[pl.BlockSpec((br, W), lambda i: (i, 0))],
            out_specs=pl.BlockSpec((br, W), lambda i: (i, 0)),
        ),
        compiler_params=pltpu.CompilerParams(
            dimension_semantics=("parallel",),
            vmem_limit_bytes=vmem_limit,
        ),
        cost_estimate=cost,
    )(x2d)


def gelu_pallas(x: jax.Array, approximate: bool = False) -> jax.Array:
    """Elementwise GELU via a Pallas TPU kernel. Accepts any shape/size.

    approximate=False (default) matches torch.nn.functional.gelu's default
    (exact erf form); approximate=True uses the tanh approximation.
    """
    orig_shape = x.shape
    dtype = x.dtype
    n = x.size
    if n == 0:
        return x

    kernel = _gelu_tanh_kernel if approximate else _gelu_exact_kernel
    flat = x.reshape(-1)

    # Split into a 128-aligned bulk (zero-copy reshape) and a tiny tail.
    bulk = (n // _LANE) * _LANE
    tail = n - bulk

    if bulk == 0:
        # Fewer than 128 elements: a kernel launch is not worth it.
        return jax.nn.gelu(x, approximate=approximate).astype(dtype)

    # Lane-dense layout: largest W dividing the bulk, preferring rows >= 8.
    W = None
    for cand in (2048, 1024, 512, 256, 128):
        if bulk % cand == 0 and (bulk // cand) >= _SUBLANE:
            W = cand
            break
    if W is None:
        for cand in (2048, 1024, 512, 256, 128):
            if bulk % cand == 0:
                W = cand
                break

    rows = bulk // W
    out_bulk = _gelu_2d(flat[:bulk].reshape(rows, W), kernel).reshape(-1)

    if tail:
        # <128-element ragged tail handled in plain JAX — avoids an extra
        # full-array HBM pad/copy pass.
        out_tail = jax.nn.gelu(flat[bulk:], approximate=approximate).astype(dtype)
        out = jnp.concatenate([out_bulk, out_tail])
    else:
        out = out_bulk
    return out.reshape(orig_shape)


if __name__ == "__main__":
    key = jax.random.PRNGKey(0)

    # NCHW-like input, consistent with typical activation usage.
    x = jax.random.normal(key, (2, 4, 16, 16), dtype=jnp.float32)
    y = gelu_pallas(x)
    jax.block_until_ready(y)
    y_ref = jax.nn.gelu(x, approximate=False)
    assert y.shape == x.shape and y.dtype == x.dtype
    assert jnp.allclose(y, y_ref, atol=1e-5, rtol=1e-5)

    # Odd-sized input: exercises the 128-aligned-bulk + JAX-tail path.
    x2 = jax.random.normal(jax.random.PRNGKey(1), (3, 5, 7, 11), dtype=jnp.float32)
    y2 = gelu_pallas(x2)
    jax.block_until_ready(y2)
    assert jnp.allclose(y2, jax.nn.gelu(x2, approximate=False), atol=1e-5, rtol=1e-5)

    # Moderate input: exercises the forced >=2-block (megacore) path.
    x3 = jax.random.normal(jax.random.PRNGKey(2), (4, 128, 1024), dtype=jnp.float32)
    y3 = gelu_pallas(x3)
    jax.block_until_ready(y3)
    assert jnp.allclose(y3, jax.nn.gelu(x3, approximate=False), atol=1e-5, rtol=1e-5)

    print("KERNEL_OK")
</pallas_src>

<mosaic_0001>
module attributes {stable_mosaic.version = 11 : i64} {
  func.func @_gelu_exact_kernel(%arg0: i32, %arg1: memref<8x256xf32, #tpu.memory_space<vmem>>, %arg2: memref<8x256xf32, #tpu.memory_space<vmem>>) attributes {dimension_semantics = [#tpu.dimension_semantics<parallel>], iteration_bounds = array<i64: 1>, scalar_prefetch = 0 : i64, scratch_operands = 0 : i64, tpu.core_type = #tpu.core_type<tc>, window_params = [{transform_indices = @transform_0, window_bounds = array<i64: 8, 256>}, {transform_indices = @transform_1, window_bounds = array<i64: 8, 256>}]} {
    %c0 = arith.constant 0 : index
    %c0_0 = arith.constant 0 : index
    %0 = vector.load %arg1[%c0, %c0_0] : memref<8x256xf32, #tpu.memory_space<vmem>>, vector<8x256xf32>
    %cst = arith.constant 5.000000e-01 : f32
    %1 = vector.broadcast %cst : f32 to vector<8x256xf32>
    %2 = arith.mulf %1, %0 : vector<8x256xf32>
    %cst_1 = arith.constant 0.707106769 : f32
    %3 = vector.broadcast %cst_1 : f32 to vector<8x256xf32>
    %4 = arith.mulf %0, %3 : vector<8x256xf32>
    %5 = math.erf %4 : vector<8x256xf32>
    %cst_2 = arith.constant 1.000000e+00 : f32
    %6 = vector.broadcast %cst_2 : f32 to vector<8x256xf32>
    %7 = arith.addf %6, %5 : vector<8x256xf32>
    %8 = arith.mulf %2, %7 : vector<8x256xf32>
    %c0_3 = arith.constant 0 : index
    %c0_4 = arith.constant 0 : index
    %9 = vector.load %arg2[%c0_3, %c0_4] : memref<8x256xf32, #tpu.memory_space<vmem>>, vector<8x256xf32>
    tpu.vector_store %arg2[%c0_3, %c0_4], %8 {strides = array<i32>} : memref<8x256xf32, #tpu.memory_space<vmem>>, vector<8x256xf32>,
    return
  }
  func.func @transform_0(%arg0: i32) -> (i32, i32) {
    %c0_i32 = arith.constant 0 : i32
    %c0_i32_0 = arith.constant 0 : i32
    return %arg0, %c0_i32 : i32, i32
  }
  func.func @transform_1(%arg0: i32) -> (i32, i32) {
    %c0_i32 = arith.constant 0 : i32
    %c0_i32_0 = arith.constant 0 : i32
    return %arg0, %c0_i32 : i32, i32
  }
}

</mosaic_0001>

<llo_original>
// kernel: tpu_custom_call.1
$region0: #{tpu_custom_call.1}
  #allocation0 [shape = 'u32[]', space=smem, size = 0x4, offset = 0x4, fixed_abs, tag = 'smem constant byte address 0x4 - core index']
  #allocation1 [shape = 'u32[144,128]{1,0:T(1,128)}', space=vmem, size = 0x12000, scoped, tag = 'internal scratch']
  %s0 = inlined_call_operand.hbm [shape: f32[8,256], index: 0, kind: input, shape index: {}]
  %s1 = inlined_call_operand.hbm [shape: f32[8,256], index: 1, kind: output, shape index: {}]
  %s2 = sld [smem:[#allocation0]]
  $region18: #{tpu_custom_call.1} parent=0
    _
  %s4 = ssub.s32 1, %s2
  %s5 = scalar_select 0, %s4, %s2
  $region1: #{tpu_custom_call.1} parent=0
    #allocation2 [shape = 'u8[8192]{0}', space=vmem, size = 0x2000, scoped, tag = 'input window, operand 0, single buffered']
    #allocation3 [shape = 's32[1]{0}', space=sflag, size = 0x4, scoped, tag = 'scoped memory for tpu_custom_call.1']
    #allocation4 [shape = 's32[1]{0}', space=sflag, size = 0x4, scoped, tag = 'scoped memory for tpu_custom_call.1']
    #allocation5 [shape = 'u8[8192]{0}', space=vmem, size = 0x2000, scoped, tag = 'output window, operand 0, single buffered']
    %6 = vsyncpa [#allocation3], 0
    %7 = vsyncpa [#allocation4], 0
    // Predicated region
    $region2: #{tpu_custom_call.1} parent=1 // pred_check
      _
    $region3: #{tpu_custom_call.1} parent=1 // pred_check_branch
      %9 = sbr.rel (0) target = $region5
    $region4: #{tpu_custom_call.1} parent=1 // pred_region
      %s11 = ssub.s32 256, 256
      %12 = vsyncadd [#allocation3], %s11
      %s14 = sshll.u32 [#allocation2], 4
      %s15 = int_to_ptr.vmem [resolvable:$true] %s14
      %17 = dma.hbm_to_vmem [thread:$0]  %s0, 256, %s15, [#allocation3]
    $region5: #{tpu_custom_call.1} parent=1 // pred_fallthru
      _
    // Predicated region
    $region6: #{tpu_custom_call.1} parent=1 // pred_check
      _
    $region7: #{tpu_custom_call.1} parent=1 // pred_check_branch
      %19 = sbr.rel (0) target = $region9
    $region8: #{tpu_custom_call.1} parent=1 // pred_region
      %20 = dma.done [#allocation3], 256
    $region9: #{tpu_custom_call.1} parent=1 // pred_fallthru
      _
    %v21 = vld [vmem:[#allocation2] sm:$0xff]
    %v22 = vld [vmem:[#allocation2 + $0x8] sm:$0xff]
    %v23 = vmul.f32 %v21, 0.5
    %v24 = vmul.f32 %v22, 0.5
    %v25 = vmul.f32 %v21, 0.70710677
    %v26 = vmul.f32 %v22, 0.70710677
    %v27 = verf.f32.pop %v25
    %v28 = verf.f32.pop %v26
    %v29 = vadd.f32 %v27, 1.0
    %v30 = vadd.f32 %v28, 1.0
    %v31 = vmul.f32 %v23, %v29
    %v32 = vmul.f32 %v24, %v30
    %33 = vst [vmem:[#allocation5] sm:$0xff] %v31
    %34 = vst [vmem:[#allocation5 + $0x8] sm:$0xff] %v32
    // Predicated region
    $region10: #{tpu_custom_call.1} parent=1 // pred_check
      _
    $region11: #{tpu_custom_call.1} parent=1 // pred_check_branch
      %36 = sbr.rel (0) target = $region13
    $region12: #{tpu_custom_call.1} parent=1 // pred_region
      %s38 = ssub.s32 256, 256
      %39 = vsyncadd [#allocation4], %s38
      %s41 = sshll.u32 [#allocation5], 4
      %s42 = int_to_ptr.vmem [resolvable:$true] %s41
      %44 = dma.vmem_to_hbm [thread:$0]  %s42, 256, %s1, [#allocation4]
    $region13: #{tpu_custom_call.1} parent=1 // pred_fallthru
      _
    // Predicated region
    $region14: #{tpu_custom_call.1} parent=1 // pred_check
      _
    $region15: #{tpu_custom_call.1} parent=1 // pred_check_branch
      %46 = sbr.rel (0) target = $region17
    $region16: #{tpu_custom_call.1} parent=1 // pred_region
      %47 = dma.done [#allocation4], 256
    $region17: #{tpu_custom_call.1} parent=1 // pred_fallthru
      _
    %48 = vsyncpa [#allocation3], 1
    %49 = vsyncpa [#allocation4], 1

</llo_original>
